<compile_context>
chip_gen: v7x
topology: tpu7x:2x2x1
jax: 0.10.0
libtpu: 0.0.40
codegen_flags: <defaults>
</compile_context>

<pallas_src>
import jax
import jax.numpy as jnp
from jax.experimental import pallas as pl
from jax.experimental.pallas import tpu as pltpu


def _round_up(x, m):
    return ((x + m - 1) // m) * m


def _round_down_to(x, m):
    return max(m, (x // m) * m)


def scalar_mix_cls_kernel(nw_ref, x_ref, cw_ref, cb_ref, out_ref):
    """Weighted CLS mix + linear classifier.

    nw_ref:  (L,)        SMEM  gamma * softmax(weights), f32 (precomputed)
    x_ref:   (TB, L, H)  VMEM  CLS (seq==0) hidden states, native dtype
    cw_ref:  (H, NL)     VMEM  classifier weight (pre-transposed), f32
    cb_ref:  (1, NL)     VMEM  classifier bias, f32
    out_ref: (TB, NL)    VMEM  logits, f32
    """
    _, num_layers, _ = x_ref.shape

    # Streamed accumulation over the (static, small) layer axis: only one
    # (TB, H) slab is live at a time; per-layer weights are cheap SMEM scalars.
    acc = nw_ref[0] * x_ref[:, 0, :].astype(jnp.float32)
    for l in range(1, num_layers):
        acc = acc + nw_ref[l] * x_ref[:, l, :].astype(jnp.float32)

    # Classifier: one MXU pass, f32 accumulation.
    out_ref[...] = (
        jnp.dot(acc, cw_ref[...], preferred_element_type=jnp.float32) + cb_ref[...]
    ).astype(out_ref.dtype)


def scalar_mix_forward(layers, weights, gamma, cls_w, cls_b, *, block_b=None):
    """layers: (B, L, S, H); weights: (L,); gamma: scalar;
    cls_w: (num_labels, H); cls_b: (num_labels,) -> logits (B, num_labels)."""
    B, L, S, H = layers.shape
    num_labels = cls_b.shape[-1]

    # Grid-invariant scalar math hoisted out of the kernel (L scalars):
    # gamma folded into the softmaxed layer weights (algebraically identical).
    norm_w = (jnp.asarray(gamma, jnp.float32)
              * jax.nn.softmax(weights.astype(jnp.float32))).astype(jnp.float32)

    cw = jnp.transpose(cls_w).astype(jnp.float32)          # (H, num_labels)
    cb = cls_b.reshape(1, num_labels).astype(jnp.float32)  # (1, num_labels)

    # Generation-aware budgets: bigger tiles / budget on 128-MiB-VMEM parts
    # (v5e/v6e), conservative on v7x (64 MiB physical).
    try:
        vmem_cap = pltpu.get_tpu_info().vmem_capacity_bytes
    except Exception:  # pragma: no cover - conservative fallback
        vmem_cap = 64 * 1024 * 1024
    big_vmem = vmem_cap >= 100 * 1024 * 1024
    vmem_limit = (64 if big_vmem else 32) * 1024 * 1024
    if block_b is None:
        block_b = 512 if big_vmem else 128

    # Keep the double-buffered input block well inside the VMEM budget.
    row_bytes = L * H * jnp.dtype(layers.dtype).itemsize
    tb_vmem_cap = _round_down_to(max(8, (vmem_limit // 4) // max(1, row_bytes)), 8)

    if B < 16:
        tb = B                                   # single grid step; tiny batch
    else:
        # >= 2 grid steps so "parallel" actually shards across v7x's 2 TCs.
        tb = min(block_b, _round_up(pl.cdiv(B, 2), 8), tb_vmem_cap)
    grid = (pl.cdiv(B, tb),)

    # CLS (seq == 0) selection.  Preferred path: free reshape to (B, L, S*H)
    # and let the BlockSpec DMA exactly columns [0:H) (a strided gather straight
    # from the original HBM buffer).  Needs a lane-aligned H; otherwise fall
    # back to a wrapper-side slice.
    if H % 128 == 0 or S == 1:
        x_in = layers.reshape(B, L, S * H)
    else:
        x_in = layers[:, :, 0, :]                # (B, L, H)
    x_spec = pl.BlockSpec((tb, L, H), lambda b: (b, 0, 0))

    return pl.pallas_call(
        scalar_mix_cls_kernel,
        out_shape=jax.ShapeDtypeStruct((B, num_labels), jnp.float32),
        grid=grid,
        in_specs=[
            pl.BlockSpec(memory_space=pltpu.MemorySpace.SMEM),     # norm_w (L,)
            x_spec,                                                # CLS block
            pl.BlockSpec((H, num_labels), lambda b: (0, 0)),       # classifier W^T
            pl.BlockSpec((1, num_labels), lambda b: (0, 0)),       # classifier b
        ],
        out_specs=pl.BlockSpec((tb, num_labels), lambda b: (b, 0)),
        compiler_params=pltpu.CompilerParams(
            dimension_semantics=("parallel",),
            vmem_limit_bytes=vmem_limit,
        ),
    )(norm_w, x_in, cw, cb)


def _reference(layers, weights, gamma, cls_w, cls_b):
    norm_w = jax.nn.softmax(weights)[None, :, None, None]
    mixed = jnp.sum(norm_w * layers, axis=1)
    return (gamma * mixed)[:, 0, :] @ cls_w.T + cls_b


if __name__ == "__main__":
    key = jax.random.PRNGKey(0)

    # Test 1: small shapes consistent with the module's forward
    # (exercises the fallback CLS-slice path since H % 128 != 0).
    B, L, S, H, NUM_LABELS = 2, 4, 8, 32, 3
    k_layers, k_w, k_b = jax.random.split(key, 3)
    layers = jax.random.normal(k_layers, (B, L, S, H), dtype=jnp.float32)
    weights = jnp.zeros((L,), dtype=jnp.float32)      # matches __init__
    gamma = jnp.float32(1.0)                          # matches __init__
    cls_w = 0.1 * jax.random.normal(k_w, (NUM_LABELS, H), dtype=jnp.float32)
    cls_b = 0.1 * jax.random.normal(k_b, (NUM_LABELS,), dtype=jnp.float32)

    out = jax.block_until_ready(scalar_mix_forward(layers, weights, gamma, cls_w, cls_b))
    ref = _reference(layers, weights, gamma, cls_w, cls_b)
    assert out.shape == (B, NUM_LABELS)
    assert jnp.allclose(out, ref, atol=1e-5, rtol=1e-5), "mismatch vs reference (test 1)"

    # Test 2: lane-aligned hidden size + multi-step batch grid
    # (exercises the BlockSpec-based CLS gather and the >=2-step grid).
    B2, L2, S2, H2 = 32, 4, 8, 128
    k_layers2, k_w2, k_b2 = jax.random.split(jax.random.PRNGKey(1), 3)
    layers2 = jax.random.normal(k_layers2, (B2, L2, S2, H2), dtype=jnp.float32)
    weights2 = 0.01 * jax.random.normal(k_w2, (L2,), dtype=jnp.float32)
    gamma2 = jnp.float32(1.5)
    cls_w2 = 0.1 * jax.random.normal(k_w2, (NUM_LABELS, H2), dtype=jnp.float32)
    cls_b2 = 0.1 * jax.random.normal(k_b2, (NUM_LABELS,), dtype=jnp.float32)

    out2 = jax.block_until_ready(scalar_mix_forward(layers2, weights2, gamma2, cls_w2, cls_b2))
    ref2 = _reference(layers2, weights2, gamma2, cls_w2, cls_b2)
    assert out2.shape == (B2, NUM_LABELS)
    assert jnp.allclose(out2, ref2, atol=1e-4, rtol=1e-4), "mismatch vs reference (test 2)"

    print("KERNEL_OK")
</pallas_src>

<mosaic_0001>
module attributes {stable_mosaic.version = 11 : i64} {
  func.func @scalar_mix_cls_kernel(%arg0: i32, %arg1: memref<4xf32, #tpu.memory_space<smem>>, %arg2: memref<2x4x32xf32, #tpu.memory_space<vmem>>, %arg3: memref<32x3xf32, #tpu.memory_space<vmem>>, %arg4: memref<1x3xf32, #tpu.memory_space<vmem>>, %arg5: memref<2x3xf32, #tpu.memory_space<vmem>>) attributes {dimension_semantics = [#tpu.dimension_semantics<parallel>], iteration_bounds = array<i64: 1>, scalar_prefetch = 0 : i64, scratch_operands = 0 : i64, tpu.core_type = #tpu.core_type<tc>, window_params = [{transform_indices = @transform_0, window_bounds = array<i64: 4>}, {transform_indices = @transform_1, window_bounds = array<i64: 2, 4, 32>}, {pipeline_mode = #tpu.pipeline_mode<synchronous>, transform_indices = @transform_2, window_bounds = array<i64: 32, 3>}, {pipeline_mode = #tpu.pipeline_mode<synchronous>, transform_indices = @transform_3, window_bounds = array<i64: 1, 3>}, {transform_indices = @transform_4, window_bounds = array<i64: 2, 3>}]} {
    %c0 = arith.constant 0 : index
    %0 = memref.load %arg1[%c0] : memref<4xf32, #tpu.memory_space<smem>>
    %c0_0 = arith.constant 0 : index
    %c0_1 = arith.constant 0 : index
    %c0_2 = arith.constant 0 : index
    %1 = vector.load %arg2[%c0_0, %c0_1, %c0_2] : memref<2x4x32xf32, #tpu.memory_space<vmem>>, vector<2x1x32xf32>
    %2 = vector.shape_cast %1 : vector<2x1x32xf32> to vector<2x32xf32>
    %3 = vector.broadcast %0 : f32 to vector<2x32xf32>
    %4 = arith.mulf %3, %2 : vector<2x32xf32>
    %c1 = arith.constant 1 : index
    %5 = memref.load %arg1[%c1] : memref<4xf32, #tpu.memory_space<smem>>
    %c0_3 = arith.constant 0 : index
    %c1_4 = arith.constant 1 : index
    %c0_5 = arith.constant 0 : index
    %6 = vector.load %arg2[%c0_3, %c1_4, %c0_5] : memref<2x4x32xf32, #tpu.memory_space<vmem>>, vector<2x1x32xf32>
    %7 = vector.shape_cast %6 : vector<2x1x32xf32> to vector<2x32xf32>
    %8 = vector.broadcast %5 : f32 to vector<2x32xf32>
    %9 = arith.mulf %8, %7 : vector<2x32xf32>
    %10 = arith.addf %4, %9 : vector<2x32xf32>
    %c2 = arith.constant 2 : index
    %11 = memref.load %arg1[%c2] : memref<4xf32, #tpu.memory_space<smem>>
    %c0_6 = arith.constant 0 : index
    %c2_7 = arith.constant 2 : index
    %c0_8 = arith.constant 0 : index
    %12 = vector.load %arg2[%c0_6, %c2_7, %c0_8] : memref<2x4x32xf32, #tpu.memory_space<vmem>>, vector<2x1x32xf32>
    %13 = vector.shape_cast %12 : vector<2x1x32xf32> to vector<2x32xf32>
    %14 = vector.broadcast %11 : f32 to vector<2x32xf32>
    %15 = arith.mulf %14, %13 : vector<2x32xf32>
    %16 = arith.addf %10, %15 : vector<2x32xf32>
    %c3 = arith.constant 3 : index
    %17 = memref.load %arg1[%c3] : memref<4xf32, #tpu.memory_space<smem>>
    %c0_9 = arith.constant 0 : index
    %c3_10 = arith.constant 3 : index
    %c0_11 = arith.constant 0 : index
    %18 = vector.load %arg2[%c0_9, %c3_10, %c0_11] : memref<2x4x32xf32, #tpu.memory_space<vmem>>, vector<2x1x32xf32>
    %19 = vector.shape_cast %18 : vector<2x1x32xf32> to vector<2x32xf32>
    %20 = vector.broadcast %17 : f32 to vector<2x32xf32>
    %21 = arith.mulf %20, %19 : vector<2x32xf32>
    %22 = arith.addf %16, %21 : vector<2x32xf32>
    %c0_12 = arith.constant 0 : index
    %c0_13 = arith.constant 0 : index
    %23 = vector.load %arg3[%c0_12, %c0_13] : memref<32x3xf32, #tpu.memory_space<vmem>>, vector<32x3xf32>
    %cst = arith.constant dense<0.000000e+00> : vector<2x3xf32>
    %24 = tpu.matmul %22, %23, %cst {dimension_numbers = #tpu.dot_dimension_numbers<[1], [0], [0], [1], [0, 0, 1, 1], [], []>} : vector<2x32xf32>, vector<32x3xf32>, vector<2x3xf32> -> vector<2x3xf32>
    %c0_14 = arith.constant 0 : index
    %c0_15 = arith.constant 0 : index
    %25 = vector.load %arg4[%c0_14, %c0_15] : memref<1x3xf32, #tpu.memory_space<vmem>>, vector<1x3xf32>
    %26 = vector.broadcast %25 : vector<1x3xf32> to vector<2x3xf32>
    %27 = arith.addf %24, %26 : vector<2x3xf32>
    %c0_16 = arith.constant 0 : index
    %c0_17 = arith.constant 0 : index
    %28 = vector.load %arg5[%c0_16, %c0_17] : memref<2x3xf32, #tpu.memory_space<vmem>>, vector<2x3xf32>
    tpu.vector_store %arg5[%c0_16, %c0_17], %27 {strides = array<i32>} : memref<2x3xf32, #tpu.memory_space<vmem>>, vector<2x3xf32>,
    return
  }
  func.func @transform_0(%arg0: i32) -> i32 {
    %c0_i32 = arith.constant 0 : i32
    %c0_i32_0 = arith.constant 0 : i32
    return %c0_i32 : i32
  }
  func.func @transform_1(%arg0: i32) -> (i32, i32, i32) {
    %c0_i32 = arith.constant 0 : i32
    %c0_i32_0 = arith.constant 0 : i32
    %c0_i32_1 = arith.constant 0 : i32
    return %arg0, %c0_i32, %c0_i32_0 : i32, i32, i32
  }
  func.func @transform_2(%arg0: i32) -> (i32, i32) {
    %c0_i32 = arith.constant 0 : i32
    %c0_i32_0 = arith.constant 0 : i32
    %c0_i32_1 = arith.constant 0 : i32
    return %c0_i32, %c0_i32_0 : i32, i32
  }
  func.func @transform_3(%arg0: i32) -> (i32, i32) {
    %c0_i32 = arith.constant 0 : i32
    %c0_i32_0 = arith.constant 0 : i32
    %c0_i32_1 = arith.constant 0 : i32
    return %c0_i32, %c0_i32_0 : i32, i32
  }
  func.func @transform_4(%arg0: i32) -> (i32, i32) {
    %c0_i32 = arith.constant 0 : i32
    %c0_i32_0 = arith.constant 0 : i32
    return %arg0, %c0_i32 : i32, i32
  }
}

</mosaic_0001>

<llo_original>
// kernel: tpu_custom_call.1
$region0: #{tpu_custom_call.1}
  #allocation0 [shape = 'u32[]', space=smem, size = 0x4, offset = 0x4, fixed_abs, tag = 'smem constant byte address 0x4 - core index']
  #allocation1 [shape = 'u32[144,128]{1,0:T(1,128)}', space=vmem, size = 0x12000, scoped, tag = 'internal scratch']
  %s0 = inlined_call_operand.vmem [shape: f32[4], index: 0, kind: input, shape index: {}]
  %s1 = inlined_call_operand.vmem [shape: f32[2,4,32], index: 1, kind: input, shape index: {}]
  %s2 = inlined_call_operand.vmem [shape: f32[32,3], index: 2, kind: input, shape index: {}]
  %s3 = inlined_call_operand.vmem [shape: f32[1,3], index: 3, kind: input, shape index: {}]
  %s4 = inlined_call_operand.hbm [shape: f32[2,3], index: 4, kind: output, shape index: {}]
  %s5 = sld [smem:[#allocation0]]
  $region30: #{tpu_custom_call.1} parent=0
    _
  %s7 = ssub.s32 1, %s5
  %s8 = scalar_select 0, %s7, %s5
  $region1: #{tpu_custom_call.1} parent=0
    #allocation2 [shape = 'u8[512]{0}', space=smem, size = 0x200, scoped, tag = 'input window, operand 0, single buffered']
    #allocation3 [shape = 's32[1]{0}', space=sflag, size = 0x4, scoped, tag = 'scoped memory for tpu_custom_call.1']
    #allocation4 [shape = 's32[1]{0}', space=sflag, size = 0x4, scoped, tag = 'scoped memory for tpu_custom_call.1']
    #allocation5 [shape = 'u8[1024]{0}', space=vmem, size = 0x400, scoped, tag = 'output window, operand 0, single buffered']
    %9 = vsyncpa [#allocation4], 0
    %10 = vsyncpa [#allocation3], 0
    // Predicated region
    $region2: #{tpu_custom_call.1} parent=1 // pred_check
      _
    $region3: #{tpu_custom_call.1} parent=1 // pred_check_branch
      %12 = sbr.rel (0) target = $region5
    $region4: #{tpu_custom_call.1} parent=1 // pred_region
      %s14 = ssub.s32 16, 16
      %15 = vsyncadd [#allocation4], %s14
      %s17 = sshll.u32 %s0, 4
      %s18 = int_to_ptr.vmem [resolvable:$true] %s17
      %20 = dma.vmem_to_smem %s18, 16, [#allocation2], [#allocation4]
    $region5: #{tpu_custom_call.1} parent=1 // pred_fallthru
      _
    // Predicated region
    $region6: #{tpu_custom_call.1} parent=1 // pred_check
      _
    $region7: #{tpu_custom_call.1} parent=1 // pred_check_branch
      %22 = sbr.rel (0) target = $region9
    $region8: #{tpu_custom_call.1} parent=1 // pred_region
      _
    $region9: #{tpu_custom_call.1} parent=1 // pred_fallthru
      _
    // Predicated region
    $region10: #{tpu_custom_call.1} parent=1 // pred_check
      _
    $region11: #{tpu_custom_call.1} parent=1 // pred_check_branch
      %24 = sbr.rel (0) target = $region13
    $region12: #{tpu_custom_call.1} parent=1 // pred_region
      _
    $region13: #{tpu_custom_call.1} parent=1 // pred_fallthru
      _
    // Predicated region
    $region14: #{tpu_custom_call.1} parent=1 // pred_check
      _
    $region15: #{tpu_custom_call.1} parent=1 // pred_check_branch
      %26 = sbr.rel (0) target = $region17
    $region16: #{tpu_custom_call.1} parent=1 // pred_region
      _
    $region17: #{tpu_custom_call.1} parent=1 // pred_fallthru
      _
    // Predicated region
    $region18: #{tpu_custom_call.1} parent=1 // pred_check
      _
    $region19: #{tpu_custom_call.1} parent=1 // pred_check_branch
      %28 = sbr.rel (0) target = $region21
    $region20: #{tpu_custom_call.1} parent=1 // pred_region
      %29 = dma.done [#allocation4], 16
    $region21: #{tpu_custom_call.1} parent=1 // pred_fallthru
      _
    %30 = sfence
    %s31 = sld [smem:[#allocation2]]
    %v32 = vld [vmem:[%s1] sm:$0x1]
    %v33 = vld [vmem:[%s1 + $0x4] sm:$0x1]
    %v34 = vstv %s31
    %v35 = vmul.f32 %v34, %v32
    %v36 = vmul.f32 %v34, %v33
    %s37 = sld [smem:[#allocation2 + $0x1]]
    %v38 = vld [vmem:[%s1 + $0x1] sm:$0x1]
    %v39 = vld [vmem:[%s1 + $0x5] sm:$0x1]
    %v40 = vstv %s37
    %v41 = vmul.f32 %v40, %v38
    %v42 = vmul.f32 %v40, %v39
    %v43 = vadd.f32 %v35, %v41
    %v44 = vadd.f32 %v36, %v42
    %s45 = sld [smem:[#allocation2 + $0x2]]
    %v46 = vld [vmem:[%s1 + $0x2] sm:$0x1]
    %v47 = vld [vmem:[%s1 + $0x6] sm:$0x1]
    %v48 = vstv %s45
    %v49 = vmul.f32 %v48, %v46
    %v50 = vmul.f32 %v48, %v47
    %v51 = vadd.f32 %v43, %v49
    %v52 = vadd.f32 %v44, %v50
    %s53 = sld [smem:[#allocation2 + $0x3]]
    %v54 = vld [vmem:[%s1 + $0x3] sm:$0x1]
    %v55 = vld [vmem:[%s1 + $0x7] sm:$0x1]
    %v56 = vstv %s53
    %v57 = vmul.f32 %v56, %v54
    %v58 = vmul.f32 %v56, %v55
    %v59 = vadd.f32 %v51, %v57
    %v60 = vadd.f32 %v52, %v58
    %v61 = vld [vmem:[%s2] sm:$0xff]
    %v62 = vld [vmem:[%s2 + $0x8] sm:$0xff]
    %v63 = vld [vmem:[%s2 + $0x10] sm:$0xff]
    %v64 = vld [vmem:[%s2 + $0x18] sm:$0xff]
    %v65 = vld [vmem:[%s3] sm:$0x1]
    %v67 = vlaneseq
    %v68 = vshrl.u32 %v67, 7
    %v69 = vsub.s32 0, %v68
    %v70 = vrot.slane %v65, %v69
    %v74 = vrot.slane %v60, 7
    %vm75 = vcmask 1041409
    %v76 = vsel %vm75, %v74, %v59
    %vm77 = vcmask 261120
    %v78 = vsel %vm77, %v76, 0
    %80 = vmatprep.subr.mxu0 0.0
    %81 = vmatpush1.msra.mxu0 %v61
    %82 = vmatprep.subr.mxu0 0.0
    %83 = vmatpush1.msra.mxu0 %v62
    %84 = vmatprep.subr.mxu0 0.0
    %85 = vmatpush1.msra.mxu0 %v63
    %86 = vmatprep.subr.mxu0 0.0
    %87 = vmatpush1.msra.mxu0 %v64
    %88 = vmatprep.subr.mxu0 0.0
    %89 = vmatpush1.msra.mxu0 0.0
    %90 = vmatprep.subr.mxu0 0.0
    %91 = vmatpush1.msra.mxu0 0.0
    %92 = vmatprep.subr.mxu0 0.0
    %93 = vmatpush1.msra.mxu0 0.0
    %94 = vmatprep.subr.mxu0 0.0
    %95 = vmatpush1.msra.mxu0 0.0
    %96 = vmatprep.subr.mxu0 0.0
    %97 = vmatpush1.msra.mxu0 0.0
    %98 = vmatprep.subr.mxu0 0.0
    %99 = vmatpush1.msra.mxu0 0.0
    %100 = vmatprep.subr.mxu0 0.0
    %101 = vmatpush1.msra.mxu0 0.0
    %102 = vmatprep.subr.mxu0 0.0
    %103 = vmatpush1.msra.mxu0 0.0
    %104 = vmatprep.subr.mxu0 0.0
    %105 = vmatpush1.msra.mxu0 0.0
    %106 = vmatprep.subr.mxu0 0.0
    %107 = vmatpush1.msra.mxu0 0.0
    %108 = vmatprep.subr.mxu0 0.0
    %109 = vmatpush1.msra.mxu0 0.0
    %110 = vmatprep.subr.mxu0 0.0
    %111 = vmatpush1.msra.mxu0 0.0
    %112 = vmatprep.subr.mxu0 0.0
    %113 = vmatpush1.msra.mxu0 0.0
    %114 = vmatprep.subr.mxu0 0.0
    %115 = vmatpush1.msra.mxu0 0.0
    %116 = vmatprep.subr.mxu0 0.0
    %117 = vmatpush1.msra.mxu0 0.0
    %118 = vmatprep.subr.mxu0 0.0
    %119 = vmatpush1.msra.mxu0 0.0
    %120 = vmatprep.subr.mxu0 0.0
    %121 = vmatpush1.msra.mxu0 0.0
    %122 = vmatprep.subr.mxu0 0.0
    %123 = vmatpush1.msra.mxu0 0.0
    %124 = vmatprep.subr.mxu0 0.0
    %125 = vmatpush1.msra.mxu0 0.0
    %126 = vmatprep.subr.mxu0 0.0
    %127 = vmatpush1.msra.mxu0 0.0
    %128 = vmatprep.subr.mxu0 0.0
    %129 = vmatpush1.msra.mxu0 0.0
    %130 = vmatprep.subr.mxu0 0.0
    %131 = vmatpush1.msra.mxu0 0.0
    %132 = vmatprep.subr.mxu0 0.0
    %133 = vmatpush1.msra.mxu0 0.0
    %134 = vmatprep.subr.mxu0 0.0
    %135 = vmatpush1.msra.mxu0 0.0
    %136 = vmatprep.subr.mxu0 0.0
    %137 = vmatpush1.msra.mxu0 0.0
    %138 = vmatprep.subr.mxu0 0.0
    %139 = vmatpush1.msra.mxu0 0.0
    %140 = vmatprep.subr.mxu0 0.0
    %141 = vmatpush1.msra.mxu0 0.0
    %142 = vmatprep.subr.mxu0 0.0
    %143 = vmatpush1.msra.mxu0 0.0
    %144 = vmatprep.mubr.f32.mxu0 0.0
    %145 = vmatmul.mubr.f32.gmra.mrb[0].mxu0 %v78
    %v146 = vpop.f32.mrb[0].mxu0
    %v147 = vadd.f32 %v70, %v146
    %v148 = vpop.f32.mrb[0].mxu0
    %149 = vdwg.mxu0
    %vm150 = vcmask 17408
    %151 = vst.msk [vmem:[#allocation5] sm:$0x3] %vm150, %v147
    // Predicated region
    $region22: #{tpu_custom_call.1} parent=1 // pred_check
      _
    $region23: #{tpu_custom_call.1} parent=1 // pred_check_branch
      %153 = sbr.rel (0) target = $region25
    $region24: #{tpu_custom_call.1} parent=1 // pred_region
      %s155 = ssub.s32 32, 32
      %156 = vsyncadd [#allocation3], %s155
      %s158 = sshll.u32 [#allocation5], 4
      %s159 = int_to_ptr.vmem [resolvable:$true] %s158
      %161 = dma.vmem_to_hbm [thread:$0]  %s159, 32, %s4, [#allocation3]
    $region25: #{tpu_custom_call.1} parent=1 // pred_fallthru
      _
    // Predicated region
    $region26: #{tpu_custom_call.1} parent=1 // pred_check
      _
    $region27: #{tpu_custom_call.1} parent=1 // pred_check_branch
      %163 = sbr.rel (0) target = $region29
    $region28: #{tpu_custom_call.1} parent=1 // pred_region
      %164 = dma.done [#allocation3], 32
    $region29: #{tpu_custom_call.1} parent=1 // pred_fallthru
      _
    %165 = vsyncpa [#allocation3], 1
    %166 = vsyncpa [#allocation4], 1

</llo_original>
